<compile_context>
chip_gen: v7x
topology: tpu7x:2x2x1
jax: 0.10.0
libtpu: 0.0.40
codegen_flags: <defaults>
</compile_context>

<pallas_src>
import functools
import math

import jax
import jax.numpy as jnp
from jax.experimental import pallas as pl
from jax.experimental.pallas import tpu as pltpu


def _arcface_kernel(x_ref, w_ref, lab_ref, o_ref, *,
                    s, cos_m, sin_m, th, mm, tc, compute_dtype):
    # cos_th tile = inputs_tile @ normalized_weight_tile   (weight prepped as (D, TC))
    x = x_ref[...].astype(compute_dtype)
    cos_th = jnp.dot(x, w_ref[...], preferred_element_type=jnp.float32)
    # clamp on the f32 accumulator BEFORE sqrt(1 - cos^2) so no NaNs can appear
    cos_th = jnp.clip(cos_th, -1.0, 1.0)
    sin_th = jnp.sqrt(1.0 - cos_th * cos_th)
    cos_th_m = cos_th * cos_m - sin_th * sin_m
    # torch.where(cos_th > th, cos_th_m, cos_th - mm); the masked assignment in
    # the PyTorch code re-applies the identical condition, so one where() is exact.
    cos_th_m = jnp.where(cos_th > th, cos_th_m, cos_th - mm)

    # global class index of each column of this tile (offset by the class-tile id)
    col0 = pl.program_id(1) * tc
    classes = col0 + jax.lax.broadcasted_iota(jnp.int32, cos_th.shape, dimension=1)

    # one-hot blend without materializing a one-hot: select margin column per row
    out = jnp.where(classes == lab_ref[...], cos_th_m, cos_th)  # lab_ref is (TB, 1)
    o_ref[...] = (out * s).astype(o_ref.dtype)


def arc_prepare_weight(weight, *, dtype=jnp.bfloat16, eps=1e-12):
    """One-time (init-style) parameter prep: F.normalize(weight, dim=1), transpose
    to (in_features, out_features), cast to the matmul storage dtype. The forward
    pass then never re-reads or rewrites the raw weight."""
    w32 = weight.astype(jnp.float32)
    norm = jnp.sqrt(jnp.sum(w32 * w32, axis=1, keepdims=True))
    w_n = w32 / jnp.maximum(norm, eps)          # matches F.normalize semantics
    return w_n.T.astype(dtype)                  # (D, C)


def arc_module_forward(inputs, w_prepped, labels, *, s=65.0, m=0.5,
                       block_b=128, block_c=1024):
    """inputs: (B, D) f32, w_prepped: (D, C) from arc_prepare_weight, labels: (B,) int."""
    B, D = inputs.shape
    D2, C = w_prepped.shape
    assert D == D2, "in_features mismatch between inputs and prepared weight"

    # Tile sizes: lane-dense class tiles (multiple of 128 unless full), batch
    # tiles multiple of 8 (f32 sublane) unless full.
    TB = min(block_b, B)
    if TB != B:
        TB = max(8, (TB // 8) * 8)
    TC = min(block_c, C)
    if TC != C:
        TC = max(128, (TC // 128) * 128)

    cos_m = math.cos(m)
    sin_m = math.sin(m)
    th = math.cos(math.pi - m)
    mm = math.sin(math.pi - m) * m

    labels2d = labels.astype(jnp.int32).reshape(B, 1)

    kernel = functools.partial(
        _arcface_kernel,
        s=float(s), cos_m=cos_m, sin_m=sin_m, th=th, mm=mm,
        tc=TC, compute_dtype=w_prepped.dtype,
    )

    grid = (pl.cdiv(B, TB), pl.cdiv(C, TC))

    return pl.pallas_call(
        kernel,
        out_shape=jax.ShapeDtypeStruct((B, C), jnp.float32),
        grid=grid,
        in_specs=[
            # x tile: invariant across the class axis -> fetched once per batch tile
            pl.BlockSpec((TB, D), lambda i, j: (i, 0)),
            # weight tile: streams across the class axis -> double-buffered by Pallas
            pl.BlockSpec((D, TC), lambda i, j: (0, j)),
            # labels: tiny int32 block, index constant across class axis (no re-DMA)
            pl.BlockSpec((TB, 1), lambda i, j: (i, 0)),
        ],
        out_specs=pl.BlockSpec((TB, TC), lambda i, j: (i, j)),
        compiler_params=pltpu.CompilerParams(
            # both axes produce independent output tiles -> shardable across TCs (v7x)
            dimension_semantics=("parallel", "parallel"),
        ),
    )(inputs, w_prepped, labels2d)


if __name__ == "__main__":
    # Small shapes consistent with the module; sized so the grid has multiple
    # steps along both axes (exercises the class-iota offset and pipelining).
    B, D, C = 16, 32, 384
    s, m = 65.0, 0.5

    key = jax.random.PRNGKey(0)
    k_x, k_w, k_l = jax.random.split(key, 3)

    # xavier_normal_ init for weight of shape (out_features, in_features)
    std = math.sqrt(2.0 / (D + C))
    weight = std * jax.random.normal(k_w, (C, D), dtype=jnp.float32)
    inputs = jax.random.normal(k_x, (B, D), dtype=jnp.float32)
    labels = jax.random.randint(k_l, (B,), 0, C, dtype=jnp.int32)

    # One-time parameter prep (normalize + transpose + bf16), then the forward.
    w_prepped = arc_prepare_weight(weight, dtype=jnp.bfloat16)
    out = arc_module_forward(inputs, w_prepped, labels, s=s, m=m,
                             block_b=8, block_c=128)  # small tiles -> 2x3 grid
    out = jax.block_until_ready(out)

    # Pure-JAX reference (same math as the PyTorch forward); matmul operands are
    # rounded to the same bf16 storage precision the kernel streams from HBM.
    cos_m, sin_m = math.cos(m), math.sin(m)
    th, mm = math.cos(math.pi - m), math.sin(math.pi - m) * m
    w_norm = weight / jnp.maximum(
        jnp.sqrt(jnp.sum(weight * weight, axis=1, keepdims=True)), 1e-12)
    x_b = inputs.astype(jnp.bfloat16).astype(jnp.float32)
    w_b = w_norm.astype(jnp.bfloat16).astype(jnp.float32)
    cos_th = jnp.clip(x_b @ w_b.T, -1.0, 1.0)
    sin_th = jnp.sqrt(1.0 - cos_th * cos_th)
    ctm = jnp.where(cos_th > th, cos_th * cos_m - sin_th * sin_m, cos_th - mm)
    onehot = jax.nn.one_hot(labels, C, dtype=jnp.float32)
    ref = (onehot * ctm + (1.0 - onehot) * cos_th) * s

    assert out.shape == (B, C)
    max_err = float(jnp.max(jnp.abs(out - ref)))
    assert jnp.allclose(out, ref, atol=2e-2, rtol=1e-3), f"max_err={max_err}"
    print("KERNEL_OK")
</pallas_src>

<mosaic_0001>
module attributes {stable_mosaic.version = 11 : i64} {
  func.func @_arcface_kernel(%arg0: i32, %arg1: i32, %arg2: memref<8x32xf32, #tpu.memory_space<vmem>>, %arg3: memref<32x128xbf16, #tpu.memory_space<vmem>>, %arg4: memref<8x1xi32, #tpu.memory_space<vmem>>, %arg5: memref<8x128xf32, #tpu.memory_space<vmem>>) attributes {dimension_semantics = [#tpu.dimension_semantics<parallel>, #tpu.dimension_semantics<parallel>], iteration_bounds = array<i64: 2, 3>, scalar_prefetch = 0 : i64, scratch_operands = 0 : i64, tpu.core_type = #tpu.core_type<tc>, window_params = [{transform_indices = @transform_0, window_bounds = array<i64: 8, 32>}, {transform_indices = @transform_1, window_bounds = array<i64: 32, 128>}, {transform_indices = @transform_2, window_bounds = array<i64: 8, 1>}, {transform_indices = @transform_3, window_bounds = array<i64: 8, 128>}]} {
    %c0 = arith.constant 0 : index
    %c0_0 = arith.constant 0 : index
    %0 = vector.load %arg2[%c0, %c0_0] : memref<8x32xf32, #tpu.memory_space<vmem>>, vector<8x32xf32>
    %1 = arith.truncf %0 : vector<8x32xf32> to vector<8x32xbf16>
    %c0_1 = arith.constant 0 : index
    %c0_2 = arith.constant 0 : index
    %2 = vector.load %arg3[%c0_1, %c0_2] : memref<32x128xbf16, #tpu.memory_space<vmem>>, vector<32x128xbf16>
    %cst = arith.constant dense<0.000000e+00> : vector<8x128xf32>
    %3 = tpu.matmul %1, %2, %cst {dimension_numbers = #tpu.dot_dimension_numbers<[1], [0], [0], [1], [0, 0, 1, 1], [], []>} : vector<8x32xbf16>, vector<32x128xbf16>, vector<8x128xf32> -> vector<8x128xf32>
    %cst_3 = arith.constant -1.000000e+00 : f32
    %cst_4 = arith.constant 1.000000e+00 : f32
    %4 = vector.broadcast %cst_3 : f32 to vector<8x128xf32>
    %5 = arith.maximumf %4, %3 : vector<8x128xf32>
    %6 = vector.broadcast %cst_4 : f32 to vector<8x128xf32>
    %7 = arith.minimumf %6, %5 : vector<8x128xf32>
    %8 = arith.mulf %7, %7 : vector<8x128xf32>
    %cst_5 = arith.constant 1.000000e+00 : f32
    %9 = vector.broadcast %cst_5 : f32 to vector<8x128xf32>
    %10 = arith.subf %9, %8 : vector<8x128xf32>
    %11 = math.sqrt %10 : vector<8x128xf32>
    %cst_6 = arith.constant 0.87758255 : f32
    %12 = vector.broadcast %cst_6 : f32 to vector<8x128xf32>
    %13 = arith.mulf %7, %12 : vector<8x128xf32>
    %cst_7 = arith.constant 0.47942555 : f32
    %14 = vector.broadcast %cst_7 : f32 to vector<8x128xf32>
    %15 = arith.mulf %11, %14 : vector<8x128xf32>
    %16 = arith.subf %13, %15 : vector<8x128xf32>
    %cst_8 = arith.constant -0.87758255 : f32
    %17 = vector.broadcast %cst_8 : f32 to vector<8x128xf32>
    %18 = arith.cmpf ogt, %7, %17 : vector<8x128xf32>
    %cst_9 = arith.constant 0.239712775 : f32
    %19 = vector.broadcast %cst_9 : f32 to vector<8x128xf32>
    %20 = arith.subf %7, %19 : vector<8x128xf32>
    %21 = arith.select %18, %16, %20 : vector<8x128xi1>, vector<8x128xf32>
    %c128_i32 = arith.constant 128 : i32
    %22 = arith.muli %arg1, %c128_i32 : i32
    %23 = tpu.iota {dimensions = array<i32: 1>} : vector<8x128xi32>
    %24 = vector.broadcast %22 : i32 to vector<8x128xi32>
    %25 = arith.addi %24, %23 : vector<8x128xi32>
    %c0_10 = arith.constant 0 : index
    %c0_11 = arith.constant 0 : index
    %26 = vector.load %arg4[%c0_10, %c0_11] : memref<8x1xi32, #tpu.memory_space<vmem>>, vector<8x1xi32>
    %27 = vector.broadcast %26 : vector<8x1xi32> to vector<8x128xi32>
    %28 = arith.cmpi eq, %25, %27 : vector<8x128xi32>
    %29 = arith.select %28, %21, %7 : vector<8x128xi1>, vector<8x128xf32>
    %cst_12 = arith.constant 6.500000e+01 : f32
    %30 = vector.broadcast %cst_12 : f32 to vector<8x128xf32>
    %31 = arith.mulf %29, %30 : vector<8x128xf32>
    %c0_13 = arith.constant 0 : index
    %c0_14 = arith.constant 0 : index
    %32 = vector.load %arg5[%c0_13, %c0_14] : memref<8x128xf32, #tpu.memory_space<vmem>>, vector<8x128xf32>
    tpu.vector_store %arg5[%c0_13, %c0_14], %31 {strides = array<i32>} : memref<8x128xf32, #tpu.memory_space<vmem>>, vector<8x128xf32>,
    return
  }
  func.func @transform_0(%arg0: i32, %arg1: i32) -> (i32, i32) {
    %c0_i32 = arith.constant 0 : i32
    %c0_i32_0 = arith.constant 0 : i32
    return %arg0, %c0_i32 : i32, i32
  }
  func.func @transform_1(%arg0: i32, %arg1: i32) -> (i32, i32) {
    %c0_i32 = arith.constant 0 : i32
    %c0_i32_0 = arith.constant 0 : i32
    return %c0_i32, %arg1 : i32, i32
  }
  func.func @transform_2(%arg0: i32, %arg1: i32) -> (i32, i32) {
    %c0_i32 = arith.constant 0 : i32
    %c0_i32_0 = arith.constant 0 : i32
    return %arg0, %c0_i32 : i32, i32
  }
  func.func @transform_3(%arg0: i32, %arg1: i32) -> (i32, i32) {
    %c0_i32 = arith.constant 0 : i32
    return %arg0, %arg1 : i32, i32
  }
}

</mosaic_0001>

<llo_original>
// kernel: tpu_custom_call.1
$region0: #{tpu_custom_call.1}
  #allocation0 [shape = 'u32[]', space=smem, size = 0x4, offset = 0x4, fixed_abs, tag = 'smem constant byte address 0x4 - core index']
  #allocation1 [shape = 'u32[144,128]{1,0:T(1,128)}', space=vmem, size = 0x12000, scoped, tag = 'internal scratch']
  %s0 = inlined_call_operand.vmem [shape: f32[16,32], index: 0, kind: input, shape index: {}]
  %s1 = inlined_call_operand.hbm [shape: bf16[32,384], index: 1, kind: input, shape index: {}]
  %s2 = inlined_call_operand.vmem [shape: s32[16,1], index: 2, kind: input, shape index: {}]
  %s3 = inlined_call_operand.hbm [shape: f32[16,384], index: 3, kind: output, shape index: {}]
  %s4 = sld [smem:[#allocation0]]
  $region49: #{tpu_custom_call.1} parent=0
    _
  %s6 = ssub.s32 1, %s4
  %s7 = scalar_select 0, %s6, %s4
  $region1: #{tpu_custom_call.1} parent=0
    #allocation2 [shape = 'u8[16384]{0}', space=vmem, size = 0x4000, scoped, tag = 'input window, operand 1']
    #allocation3 [shape = 's32[2]{0}', space=sflag, size = 0x8, scoped, tag = 'scoped memory for tpu_custom_call.1']
    #allocation4 [shape = 's32[2]{0}', space=sflag, size = 0x8, scoped, tag = 'scoped memory for tpu_custom_call.1']
    #allocation5 [shape = 'u8[8192]{0}', space=vmem, size = 0x2000, scoped, tag = 'output window, operand 0']
    %8 = vsyncpa [#allocation3], 0
    %s9 = scalar_lea.sflag [#allocation3], 1
    %10 = vsyncpa %s9, 0
    %11 = vsyncpa [#allocation4], 0
    %s12 = scalar_lea.sflag [#allocation4], 1
    %13 = vsyncpa %s12, 0
    loop: start=0, step=1, limit=8
    $region2: #{tpu_custom_call.1} parent=1 // loop_pre_header
      _
    $region3: #{tpu_custom_call.1} parent=1 // loop_header
      %s15 = sphi 0, %s19
      %p16 = scmp.ge.s32.totalorder %s15, 8
      %s22 = sphi 0, %s34
      %s23 = sphi 0, %s30
      %s24 = sphi 0, %s22
      %s25 = sphi 0, %s23
      %s26 = sphi 0, %s24
      %s27 = sphi 0, %s25
      %s37 = sphi 0, %s39
      %s40 = sphi 0, %s37
      %s41 = sphi 0, %s40
      %s57 = sphi 0, %s41
      %s63 = sphi 0, %s65
      %s66 = sphi 0, %s63
      %s67 = sphi 0, %s66
      %s83 = sphi 0, %s67
      %s89 = sphi 0, %s91
      %s92 = sphi 0, %s89
      %s93 = sphi 0, %s92
      %s109 = sphi 0, %s93
      %s117 = sphi 0, %s119
      %s120 = sphi 0, %s117
      %s121 = sphi 0, %s120
      %s137 = sphi 0, %s121
    $region4: #{tpu_custom_call.1} parent=1 // loop_header_branch
      %18 = sbr.rel (%p16) target = $region8
    $region5: #{tpu_custom_call.1} parent=1 // loop_body
      %s20 = ssub.s32 %s15, 1
      %s21 = ssub.s32 %s15, 2
      %s28 = sadd.s32 1, %s23
      %p29 = scmp.ge.s32.totalorder %s28, 3
      %s30 = scalar_select %p29, 0, %s28
      %s31 = sadd.s32 1, %s22
      %s32 = scalar_select %p29, %s31, %s22
      %p33 = scmp.ge.s32.totalorder %s32, 2
      %s34 = scalar_select %p33, 0, %s32
      %s35 = ssub.s32 %s22, %s34
      %p36 = scmp.eq.s32.totalorder %s35, 0
      %s38 = sadd.s32 %s37, 1
      %s39 = scalar_select %p36, %s37, %s38
      %p42 = pneg %p36
      %p43 = scmp.eq.s32.totalorder %s15, 5
      %p44 = por %p42, %p43
      %p45 = scmp.ne.s32.totalorder %s37, %s40
      %p46 = scmp.eq.s32.totalorder %s15, 0
      %p47 = por %p45, %p46
      %p48 = scmp.ne.s32.totalorder %s37, %s40
      %p49 = scmp.eq.s32.totalorder %s20, 5
      %p50 = por %p48, %p49
      %p51 = scmp.ne.s32.totalorder %s40, %s41
      %p52 = scmp.eq.s32.totalorder %s20, 0
      %p53 = por %p51, %p52
      %p54 = scmp.ne.s32.totalorder %s40, %s41
      %p55 = scmp.eq.s32.totalorder %s21, 5
      %p56 = por %p54, %p55
      %p58 = scmp.ne.s32.totalorder %s41, %s57
      %p59 = scmp.eq.s32.totalorder %s21, 0
      %p60 = por %p58, %p59
      %s61 = ssub.s32 %s23, %s30
      %p62 = scmp.eq.s32.totalorder %s61, 0
      %s64 = sadd.s32 %s63, 1
      %s65 = scalar_select %p62, %s63, %s64
      %p68 = pneg %p62
      %p69 = scmp.eq.s32.totalorder %s15, 5
      %p70 = por %p68, %p69
      %p71 = scmp.ne.s32.totalorder %s63, %s66
      %p72 = scmp.eq.s32.totalorder %s15, 0
      %p73 = por %p71, %p72
      %p74 = scmp.ne.s32.totalorder %s63, %s66
      %p75 = scmp.eq.s32.totalorder %s20, 5
      %p76 = por %p74, %p75
      %p77 = scmp.ne.s32.totalorder %s66, %s67
      %p78 = scmp.eq.s32.totalorder %s20, 0
      %p79 = por %p77, %p78
      %p80 = scmp.ne.s32.totalorder %s66, %s67
      %p81 = scmp.eq.s32.totalorder %s21, 5
      %p82 = por %p80, %p81
      %p84 = scmp.ne.s32.totalorder %s67, %s83
      %p85 = scmp.eq.s32.totalorder %s21, 0
      %p86 = por %p84, %p85
      %s87 = ssub.s32 %s22, %s34
      %p88 = scmp.eq.s32.totalorder %s87, 0
      %s90 = sadd.s32 %s89, 1
      %s91 = scalar_select %p88, %s89, %s90
      %p94 = pneg %p88
      %p95 = scmp.eq.s32.totalorder %s15, 5
      %p96 = por %p94, %p95
      %p97 = scmp.ne.s32.totalorder %s89, %s92
      %p98 = scmp.eq.s32.totalorder %s15, 0
      %p99 = por %p97, %p98
      %p100 = scmp.ne.s32.totalorder %s89, %s92
      %p101 = scmp.eq.s32.totalorder %s20, 5
      %p102 = por %p100, %p101
      %p103 = scmp.ne.s32.totalorder %s92, %s93
      %p104 = scmp.eq.s32.totalorder %s20, 0
      %p105 = por %p103, %p104
      %p106 = scmp.ne.s32.totalorder %s92, %s93
      %p107 = scmp.eq.s32.totalorder %s21, 5
      %p108 = por %p106, %p107
      %p110 = scmp.ne.s32.totalorder %s93, %s109
      %p111 = scmp.eq.s32.totalorder %s21, 0
      %p112 = por %p110, %p111
      %s113 = ssub.s32 %s22, %s34
      %s114 = ssub.s32 %s23, %s30
      %s115 = sor.u32 %s113, %s114
      %p116 = scmp.eq.s32.totalorder %s115, 0
      %s118 = sadd.s32 %s117, 1
      %s119 = scalar_select %p116, %s117, %s118
      %p122 = pneg %p116
      %p123 = scmp.eq.s32.totalorder %s15, 5
      %p124 = por %p122, %p123
      %p125 = scmp.ne.s32.totalorder %s117, %s120
      %p126 = scmp.eq.s32.totalorder %s15, 0
      %p127 = por %p125, %p126
      %p128 = scmp.ne.s32.totalorder %s117, %s120
      %p129 = scmp.eq.s32.totalorder %s20, 5
      %p130 = por %p128, %p129
      %p131 = scmp.ne.s32.totalorder %s120, %s121
      %p132 = scmp.eq.s32.totalorder %s20, 0
      %p133 = por %p131, %p132
      %p134 = scmp.ne.s32.totalorder %s120, %s121
      %p135 = scmp.eq.s32.totalorder %s21, 5
      %p136 = por %p134, %p135
      %p138 = scmp.ne.s32.totalorder %s121, %s137
      %p139 = scmp.eq.s32.totalorder %s21, 0
      %p140 = por %p138, %p139
      %p141 = scmp.le.s32.totalorder 1, %s15
      %p142 = scmp.lt.s32.totalorder %s15, 7
      %p143 = pnand %p141, %p142
      %p144 = pneg %p143
      // Predicated region
      $region9: #{tpu_custom_call.1} parent=5 // pred_check
        _
      $region10: #{tpu_custom_call.1} parent=5 // pred_check_branch
        %146 = sbr.rel (%p143) target = $region12
      $region11: #{tpu_custom_call.1} parent=5 // pred_region
        %s147 = ssub.s32 %s15, 1
      $region12: #{tpu_custom_call.1} parent=5 // pred_fallthru
        _
      %p148 = scmp.lt.s32.totalorder %s15, 6
      // Predicated region
      $region13: #{tpu_custom_call.1} parent=5 // pred_check
        %p149 = pneg %p148
      $region14: #{tpu_custom_call.1} parent=5 // pred_check_branch
        %151 = sbr.rel (%p149) target = $region16
      $region15: #{tpu_custom_call.1} parent=5 // pred_region
        // Predicated region
        $region17: #{tpu_custom_call.1} parent=15 // pred_check
          %p152 = pneg %p47
        $region18: #{tpu_custom_call.1} parent=15 // pred_check_branch
          %154 = sbr.rel (%p152) target = $region20
        $region19: #{tpu_custom_call.1} parent=15 // pred_region
          %p155 = scmp.lt.s32.totalorder %s22, 1
          %s156 = scalar_select %p155, %s22, 1
          %s157 = smul.addr %s156, 8
          %s158 = scalar_lea.vmem %s0, %s157
        $region20: #{tpu_custom_call.1} parent=15 // pred_fallthru
          _
        // Predicated region
        $region21: #{tpu_custom_call.1} parent=15 // pred_check
          %p159 = pneg %p73
        $region22: #{tpu_custom_call.1} parent=15 // pred_check_branch
          %161 = sbr.rel (%p159) target = $region24
        $region23: #{tpu_custom_call.1} parent=15 // pred_region
          %s162 = sand.u32 %s63, 1
          %s163 = scalar_lea.sflag [#allocation3], %s162
          %s164 = sand.u32 %s63, 1
          %s165 = smul.addr %s164, 16
          %s166 = scalar_lea.vmem [#allocation2], %s165
          %s168 = ssub.s32 256, 256
          %169 = vsyncadd %s163, %s168
          %s170 = smul.addr %s23, 64
          %s171 = scalar_lea.hbm %s1, %s170
          %s172 = sshll.u32 %s166, 4
          %s173 = int_to_ptr.vmem [resolvable:$true] %s172
          %178 = dma.hbm_to_vmem [thread:$0]  %s171, 256, %s173, %s163, 192, 64, 4
        $region24: #{tpu_custom_call.1} parent=15 // pred_fallthru
          _
        // Predicated region
        $region25: #{tpu_custom_call.1} parent=15 // pred_check
          %p179 = pneg %p99
        $region26: #{tpu_custom_call.1} parent=15 // pred_check_branch
          %181 = sbr.rel (%p179) target = $region28
        $region27: #{tpu_custom_call.1} parent=15 // pred_region
          %p182 = scmp.lt.s32.totalorder %s22, 1
          %s183 = scalar_select %p182, %s22, 1
          %s184 = smul.addr %s183, 8
          %s185 = scalar_lea.vmem %s2, %s184
        $region28: #{tpu_custom_call.1} parent=15 // pred_fallthru
          _
      $region16: #{tpu_custom_call.1} parent=5 // pred_fallthru
        _
      %p186 = scmp.le.s32.totalorder 1, %s15
      %p187 = scmp.lt.s32.totalorder %s15, 7
      %p188 = pnand %p186, %p187
      %p189 = pneg %p188
      // Predicated region
      $region29: #{tpu_custom_call.1} parent=5 // pred_check
        _
      $region30: #{tpu_custom_call.1} parent=5 // pred_check_branch
        %191 = sbr.rel (%p188) target = $region32
      $region31: #{tpu_custom_call.1} parent=5 // pred_region
        %s192 = ssub.s32 %s15, 1
        %s193 = sand.u32 %s66, 1
        %s194 = scalar_lea.sflag [#allocation3], %s193
        %s195 = sand.u32 %s66, 1
        %s196 = smul.addr %s195, 16
        %s197 = scalar_lea.vmem [#allocation2], %s196
        // Predicated region
        $region33: #{tpu_custom_call.1} parent=31 // pred_check
          %p198 = pneg %p79
        $region34: #{tpu_custom_call.1} parent=31 // pred_check_branch
          %200 = sbr.rel (%p198) target = $region36
        $region35: #{tpu_custom_call.1} parent=31 // pred_region
          %201 = dma.done %s194, 256
        $region36: #{tpu_custom_call.1} parent=31 // pred_fallthru
          _
        %p202 = scmp.lt.s32.totalorder %s24, 1
        %s203 = scalar_select %p202, %s24, 1
        %s204 = smul.addr %s203, 8
        %s205 = scalar_lea.vmem %s0, %s204
        %p206 = pneg %p53
        %p207 = pneg %p50
        %s208 = sand.u32 %s66, 1
        %s209 = scalar_lea.sflag [#allocation3], %s208
        %s210 = sand.u32 %s66, 1
        %s211 = smul.addr %s210, 16
        %s212 = scalar_lea.vmem [#allocation2], %s211
        %p213 = pneg %p79
        %p214 = pneg %p76
        %p215 = scmp.lt.s32.totalorder %s24, 1
        %s216 = scalar_select %p215, %s24, 1
        %s217 = smul.addr %s216, 8
        %s218 = scalar_lea.vmem %s2, %s217
        %p219 = pneg %p105
        %p220 = pneg %p102
        %p221 = pneg %p133
        %p222 = pneg %p130
        %s223 = sand.u32 %s120, 1
        %s224 = scalar_lea.sflag [#allocation4], %s223
        %s225 = sand.u32 %s120, 1
        %s226 = smul.addr %s225, 8
        %s227 = scalar_lea.vmem [#allocation5], %s226
        %p228 = scmp.lt.s32.totalorder %s24, 1
        %s229 = scalar_select %p228, %s24, 1
        %s230 = smul.addr %s229, 8
        %s231 = scalar_lea.vmem %s0, %s230
        %p232 = scmp.lt.s32.totalorder %s24, 1
        %s233 = scalar_select %p232, %s24, 1
        %s234 = smul.addr %s233, 8
        %s235 = scalar_lea.vmem %s2, %s234
        %v237 = vld [vmem:[%s231] sm:$0xff]
        %v238 = vpack.c.bf16 %v237, %v237
        %v239 = vld [vmem:[%s197] sm:$0xf]
        %v240 = vld [vmem:[%s197 + $0x4] sm:$0xf]
        %v241 = vld [vmem:[%s197 + $0x8] sm:$0xf]
        %v242 = vld [vmem:[%s197 + $0xc] sm:$0xf]
        %v247 = vunpack.c.l.b16 %v239
        %v248 = vunpack.c.l.b16 %v240
        %v249 = vunpack.c.l.b16 %v241
        %v250 = vunpack.c.l.b16 %v242
        %v251 = vpack.c.b16 %v248, %v247
        %v252 = vpack.c.b16 %v250, %v249
        %vm255 = vcmask 261120
        %v257 = vsel %vm255, %v238, 0
        %259 = vmatprep.subr.bf16.mxu0 0
        %260 = vmatpush1.bf16.msra.mxu0 %v251
        %261 = vmatprep.subr.bf16.mxu0 0
        %262 = vmatpush1.bf16.msra.mxu0 %v252
        %263 = vmatprep.subr.bf16.mxu0 0
        %264 = vmatpush1.bf16.msra.mxu0 0
        %265 = vmatprep.subr.bf16.mxu0 0
        %266 = vmatpush1.bf16.msra.mxu0 0
        %267 = vmatprep.subr.bf16.mxu0 0
        %268 = vmatpush1.bf16.msra.mxu0 0
        %269 = vmatprep.subr.bf16.mxu0 0
        %270 = vmatpush1.bf16.msra.mxu0 0
        %271 = vmatprep.subr.bf16.mxu0 0
        %272 = vmatpush1.bf16.msra.mxu0 0
        %273 = vmatprep.subr.bf16.mxu0 0
        %274 = vmatpush1.bf16.msra.mxu0 0
        %275 = vmatprep.subr.bf16.mxu0 0
        %276 = vmatpush1.bf16.msra.mxu0 0
        %277 = vmatprep.subr.bf16.mxu0 0
        %278 = vmatpush1.bf16.msra.mxu0 0
        %279 = vmatprep.subr.bf16.mxu0 0
        %280 = vmatpush1.bf16.msra.mxu0 0
        %281 = vmatprep.subr.bf16.mxu0 0
        %282 = vmatpush1.bf16.msra.mxu0 0
        %283 = vmatprep.subr.bf16.mxu0 0
        %284 = vmatpush1.bf16.msra.mxu0 0
        %285 = vmatprep.subr.bf16.mxu0 0
        %286 = vmatpush1.bf16.msra.mxu0 0
        %287 = vmatprep.subr.bf16.mxu0 0
        %288 = vmatpush1.bf16.msra.mxu0 0
        %289 = vmatprep.subr.bf16.mxu0 0
        %290 = vmatpush1.bf16.msra.mxu0 0
        %291 = vmatprep.mubr.bf16.mxu0 0
        %292 = vmatmul.mubr.bf16.gmra.mrb[0].mxu0 %v257
        %v293 = vpop.f32.mrb[0].mxu0
        %v294 = vadd.f32 0.0, %v293
        %v295 = vpop.f32.mrb[0].mxu0
        %v296 = vpop.f32.mrb[0].mxu0
        %v297 = vpop.f32.mrb[0].mxu0
        %298 = vdwg.mxu0
        %v299 = vmax.f32 %v294, -1.0
        %v300 = vmin.f32 %v299, 1.0
        %v301 = vmul.f32 %v300, %v300
        %v302 = vsub.f32 1.0, %v301
        %v303 = vrsqrt.pop %v302
        %v304 = vmul.f32 %v302, %v303
        %vm305 = vcmp.eq.f32.partialorder %v302, inf
        %v306 = vsel %vm305, %v302, %v304
        %vm307 = vcmp.eq.f32.partialorder %v302, 0.0
        %v308 = vand.u32 %v302, 2147483648
        %v309 = vsel %vm307, %v308, %v306
        %v310 = vmul.f32 %v300, 0.87758255
        %v311 = vmul.f32 %v309, 0.47942555
        %v312 = vsub.f32 %v310, %v311
        %vm313 = vcmp.gt.f32.partialorder %v300, -0.87758255
        %v314 = vsub.f32 %v300, 0.23971277
        %v315 = vsel %vm313, %v312, %v314
        %s316 = smul.u32 %s25, 128
        %v317 = vlaneseq
        %v318 = vand.u32 %v317, 127
        %v319 = vstv %s316
        %v320 = vadd.s32 %v319, %v318
        %v321 = vld [vmem:[%s235] sm:$0xff]
        %322 = vset.pattern.permute.xlu0 0
        %323 = vperm.xlu0 %322, %v321
        %v324 = vpop.permute.xlu0 %323
        %vm325 = vcmp.eq.s32.totalorder %v320, %v324
        %v326 = vsel %vm325, %v315, %v300
        %v327 = vmul.f32 %v326, 65.0
        %328 = vst [vmem:[%s227] sm:$0xff] %v327
        %s329 = sand.u32 %s120, 1
        %s330 = scalar_lea.sflag [#allocation4], %s329
        %s331 = sand.u32 %s120, 1
        %s332 = smul.addr %s331, 8
        %s333 = scalar_lea.vmem [#allocation5], %s332
        // Predicated region
        $region37: #{tpu_custom_call.1} parent=31 // pred_check
          %p334 = pneg %p130
        $region38: #{tpu_custom_call.1} parent=31 // pred_check_branch
          %336 = sbr.rel (%p334) target = $region40
        $region39: #{tpu_custom_call.1} parent=31 // pred_region
          %s338 = ssub.s32 128, 128
          %339 = vsyncadd %s330, %s338
          %s340 = smul.addr %s24, 3
          %s341 = sadd.s32 %s25, %s340
          %s342 = smul.addr %s341, 128
          %s343 = scalar_lea.hbm %s3, %s342
          %s345 = sshll.u32 %s333, 4
          %s346 = int_to_ptr.vmem [resolvable:$true] %s345
          %348 = dma.vmem_to_hbm [thread:$0]  %s346, 128, %s343, %s330
        $region40: #{tpu_custom_call.1} parent=31 // pred_fallthru
          _
      $region32: #{tpu_custom_call.1} parent=5 // pred_fallthru
        _
      %p349 = scmp.le.s32.totalorder 2, %s15
      // Predicated region
      $region41: #{tpu_custom_call.1} parent=5 // pred_check
        %p350 = pneg %p349
      $region42: #{tpu_custom_call.1} parent=5 // pred_check_branch
        %352 = sbr.rel (%p350) target = $region44
      $region43: #{tpu_custom_call.1} parent=5 // pred_region
        %s353 = ssub.s32 %s15, 2
        // Predicated region
        $region45: #{tpu_custom_call.1} parent=43 // pred_check
          %p354 = pneg %p136
        $region46: #{tpu_custom_call.1} parent=43 // pred_check_branch
          %356 = sbr.rel (%p354) target = $region48
        $region47: #{tpu_custom_call.1} parent=43 // pred_region
          %s357 = sand.u32 %s121, 1
          %s358 = scalar_lea.sflag [#allocation4], %s357
          %s359 = sand.u32 %s121, 1
          %s360 = smul.addr %s359, 8
          %s361 = scalar_lea.vmem [#allocation5], %s360
          %362 = dma.done %s358, 128
        $region48: #{tpu_custom_call.1} parent=43 // pred_fallthru
          _
      $region44: #{tpu_custom_call.1} parent=5 // pred_fallthru
        _
    $region6: #{tpu_custom_call.1} parent=1 // loop_footer
      %s19 = sadd.s32 1, %s15
    $region7: #{tpu_custom_call.1} parent=1 // loop_footer_branch
      %14 = sbr.rel target = $region3
    $region8: #{tpu_custom_call.1} parent=1 // loop_exit
      _
    %363 = vsyncpa [#allocation3], 1
    %s364 = scalar_lea.sflag [#allocation3], 1
    %365 = vsyncpa %s364, 1
    %366 = vsyncpa [#allocation4], 1
    %s367 = scalar_lea.sflag [#allocation4], 1
    %368 = vsyncpa %s367, 1

</llo_original>
